<compile_context>
chip_gen: v7x
topology: tpu7x:2x2x1
jax: 0.10.0
libtpu: 0.0.40
codegen_flags: <defaults>
</compile_context>

<pallas_src>
import functools

import jax
import jax.numpy as jnp
from jax.experimental import pallas as pl
from jax.experimental.pallas import tpu as pltpu


def _mha_interact_kernel(x_ref, w_ref, o_ref, *, head_num, head_size, mxu_dtype):
    """One (block_b, F, E) slab per grid step.

    x_ref : (TB, F, E)   VMEM
    w_ref : (E, 4E)      VMEM   (columns = [W_Q | W_K | W_V | W_R])
    o_ref : (TB, F, E)   VMEM
    """
    TB, F, E = x_ref.shape
    H, d = head_num, head_size

    # (TB, F, E) -> (TB*F, E): layout-trivial (F=8 is already the sublane dim).
    x = x_ref[...].reshape(TB * F, E)

    # One fused MXU matmul for Q|K|V|R, f32 accumulate.  N = 4E = 128 lanes.
    proj = jnp.dot(x.astype(mxu_dtype), w_ref[...].astype(mxu_dtype),
                   preferred_element_type=jnp.float32)            # (TB*F, 4E)

    scale = 1.0 / (float(d) ** 0.5)
    q = proj[:, 0 * E:1 * E] * scale          # fold 1/sqrt(d) into Q once
    k = proj[:, 1 * E:2 * E]
    v = proj[:, 2 * E:3 * E]
    r = proj[:, 3 * E:4 * E].reshape(TB, F, E)   # residual projection x @ W_R

    head_outs = []
    for h in range(H):                          # static unroll; H is small
        lo = h * d
        qh = q[:, lo:lo + d].reshape(TB, F, d)
        kh = k[:, lo:lo + d].reshape(TB, F, d)
        vh = v[:, lo:lo + d].reshape(TB, F, d)

        # Batched scores over the block_b dimension: (TB, F, F).
        s = jnp.einsum('bqd,bkd->bqk', qh, kh,
                       preferred_element_type=jnp.float32)
        # Numerically stable softmax along the last axis (torch.softmax dim=-1).
        s = s - jnp.max(s, axis=-1, keepdims=True)
        e = jnp.exp(s)
        p = e * pl.reciprocal(jnp.sum(e, axis=-1, keepdims=True), approx=True)
        # TODO(synk): F.dropout on attention weights not implemented (p=0 / eval).

        head_outs.append(jnp.einsum('bqk,bkd->bqd', p, vh,
                                    preferred_element_type=jnp.float32))

    # Heads concatenated along the embed dim (matches torch.cat(torch.split(...))).
    res = jnp.concatenate(head_outs, axis=-1)   # (TB, F, E)
    res = res + r                               # residual
    o_ref[...] = jnp.maximum(res, 0.0).astype(o_ref.dtype)   # one bulk store


def multi_head_attention_interact(x, w_q, w_k, w_v, w_r, *, head_num,
                                  mxu_dtype=jnp.bfloat16, block_b=None):
    """x: (B, F, E); weights: (E, E). Returns (B, F, E) = relu(MHA(x) + x @ W_R)."""
    B, F, E = x.shape
    assert E % head_num == 0
    head_size = E // head_num

    # Fuse the four projection weights into a single (E, 4E) MXU operand.
    w_cat = jnp.concatenate([w_q, w_k, w_v, w_r], axis=1)

    # Batch tile: big enough to amortize per-step overhead, >= 2 grid steps
    # when B >= 2 (keeps both TensorCores busy on v7x), tiny VMEM footprint.
    if block_b is None:
        block_b = max(1, min(256, pl.cdiv(B, 2)))
    n_steps = pl.cdiv(B, block_b)
    B_pad = n_steps * block_b
    if B_pad != B:
        x = jnp.pad(x, ((0, B_pad - B), (0, 0), (0, 0)))

    kernel = functools.partial(_mha_interact_kernel, head_num=head_num,
                               head_size=head_size, mxu_dtype=mxu_dtype)

    out = pl.pallas_call(
        kernel,
        out_shape=jax.ShapeDtypeStruct((B_pad, F, E), x.dtype),
        grid_spec=pltpu.PrefetchScalarGridSpec(
            num_scalar_prefetch=0,
            grid=(n_steps,),
            in_specs=[
                pl.BlockSpec((block_b, F, E), lambda b: (b, 0, 0)),   # x slab
                pl.BlockSpec((E, 4 * E), lambda b: (0, 0)),           # fused W
            ],
            out_specs=pl.BlockSpec((block_b, F, E), lambda b: (b, 0, 0)),
        ),
        compiler_params=pltpu.CompilerParams(
            dimension_semantics=("parallel",)),
    )(x, w_cat)
    return out[:B]


def _xavier_uniform(key, shape, dtype=jnp.float32):
    fan_in, fan_out = shape[0], shape[1]
    limit = (6.0 / (fan_in + fan_out)) ** 0.5
    return jax.random.uniform(key, shape, dtype, minval=-limit, maxval=limit)


def _reference(x, w_q, w_k, w_v, w_r, head_num, proj_dtype=jnp.float32):
    """Pure-JAX reference mirroring the PyTorch forward (dropout p=0).

    proj_dtype=bfloat16 mimics the kernel's bf16-operand / f32-accumulate MXU path.
    """
    B, F, E = x.shape
    d = E // head_num
    f32 = jnp.float32
    xc = x.astype(proj_dtype).astype(f32)

    def proj(w):
        return jnp.einsum('bfe,eo->bfo', xc, w.astype(proj_dtype).astype(f32))

    q, k, v, r = proj(w_q), proj(w_k), proj(w_v), proj(w_r)
    qh = jnp.stack(jnp.split(q, head_num, axis=2))     # (H, B, F, d)
    kh = jnp.stack(jnp.split(k, head_num, axis=2))
    vh = jnp.stack(jnp.split(v, head_num, axis=2))
    inner = jnp.einsum('hbqd,hbkd->hbqk', qh, kh) / (d ** 0.5)
    attn = jax.nn.softmax(inner, axis=-1)
    res = jnp.einsum('hbqk,hbkd->hbqd', attn, vh)       # (H, B, F, d)
    res = jnp.concatenate(jnp.split(res, head_num, axis=0), axis=-1)[0]  # (B, F, E)
    res = res + r
    return jax.nn.relu(res)


if __name__ == "__main__":
    # Small shapes consistent with AutoInt: batch=2, feature_fields=8, embed=32, heads=4.
    B, F, E, H = 2, 8, 32, 4

    key = jax.random.PRNGKey(0)
    kx, kq, kk, kv, kr = jax.random.split(key, 5)

    x = jax.random.normal(kx, (B, F, E), dtype=jnp.float32)
    w_q = _xavier_uniform(kq, (E, E))
    w_k = _xavier_uniform(kk, (E, E))
    w_v = _xavier_uniform(kv, (E, E))
    w_r = _xavier_uniform(kr, (E, E))

    # Tolerances are dominated by the approx (EUP) reciprocal in the softmax,
    # not by the matmuls.
    TOL = dict(atol=2e-2, rtol=2e-2)

    # f32-MXU path.
    out_f32 = jax.block_until_ready(
        multi_head_attention_interact(x, w_q, w_k, w_v, w_r, head_num=H,
                                      mxu_dtype=jnp.float32))
    ref_f32 = _reference(x, w_q, w_k, w_v, w_r, H)
    assert out_f32.shape == (B, F, E)
    assert jnp.allclose(out_f32, ref_f32, **TOL), "f32 path mismatch vs reference"

    # Default bf16-MXU path (v6e/v7x feedback); compare against bf16-rounded reference.
    out_bf16 = jax.block_until_ready(
        multi_head_attention_interact(x, w_q, w_k, w_v, w_r, head_num=H))
    ref_bf16 = _reference(x, w_q, w_k, w_v, w_r, H, proj_dtype=jnp.bfloat16)
    assert out_bf16.shape == (B, F, E)
    assert jnp.allclose(out_bf16, ref_bf16, **TOL), "bf16 path mismatch vs reference"

    print("KERNEL_OK")
</pallas_src>

<mosaic_0001>
module attributes {stable_mosaic.version = 11 : i64} {
  func.func @_mha_interact_kernel(%arg0: i32, %arg1: memref<1x8x32xf32, #tpu.memory_space<vmem>>, %arg2: memref<32x128xf32, #tpu.memory_space<vmem>>, %arg3: memref<1x8x32xf32, #tpu.memory_space<vmem>>) attributes {dimension_semantics = [#tpu.dimension_semantics<parallel>], iteration_bounds = array<i64: 2>, scalar_prefetch = 0 : i64, scratch_operands = 0 : i64, tpu.core_type = #tpu.core_type<tc>, window_params = [{transform_indices = @transform_0, window_bounds = array<i64: 1, 8, 32>}, {pipeline_mode = #tpu.pipeline_mode<synchronous>, transform_indices = @transform_1, window_bounds = array<i64: 32, 128>}, {transform_indices = @transform_2, window_bounds = array<i64: 1, 8, 32>}]} {
    %c0 = arith.constant 0 : index
    %c0_0 = arith.constant 0 : index
    %c0_1 = arith.constant 0 : index
    %0 = vector.load %arg1[%c0, %c0_0, %c0_1] : memref<1x8x32xf32, #tpu.memory_space<vmem>>, vector<1x8x32xf32>
    %1 = vector.shape_cast %0 : vector<1x8x32xf32> to vector<8x32xf32>
    %c0_2 = arith.constant 0 : index
    %c0_3 = arith.constant 0 : index
    %2 = vector.load %arg2[%c0_2, %c0_3] : memref<32x128xf32, #tpu.memory_space<vmem>>, vector<32x128xf32>
    %cst = arith.constant dense<0.000000e+00> : vector<8x128xf32>
    %3 = tpu.matmul %1, %2, %cst {dimension_numbers = #tpu.dot_dimension_numbers<[1], [0], [0], [1], [0, 0, 1, 1], [], []>} : vector<8x32xf32>, vector<32x128xf32>, vector<8x128xf32> -> vector<8x128xf32>
    %4 = vector.extract_strided_slice %3 {offsets = [0, 0], sizes = [8, 32], strides = [1, 1]} : vector<8x128xf32> to vector<8x32xf32>
    %cst_4 = arith.constant 0.353553385 : f32
    %5 = vector.broadcast %cst_4 : f32 to vector<8x32xf32>
    %6 = arith.mulf %4, %5 : vector<8x32xf32>
    %7 = vector.extract_strided_slice %3 {offsets = [0, 32], sizes = [8, 32], strides = [1, 1]} : vector<8x128xf32> to vector<8x32xf32>
    %8 = vector.extract_strided_slice %3 {offsets = [0, 64], sizes = [8, 32], strides = [1, 1]} : vector<8x128xf32> to vector<8x32xf32>
    %9 = vector.extract_strided_slice %3 {offsets = [0, 96], sizes = [8, 32], strides = [1, 1]} : vector<8x128xf32> to vector<8x32xf32>
    %10 = vector.shape_cast %9 : vector<8x32xf32> to vector<1x8x32xf32>
    %11 = vector.extract_strided_slice %6 {offsets = [0, 0], sizes = [8, 8], strides = [1, 1]} : vector<8x32xf32> to vector<8x8xf32>
    %12 = vector.shape_cast %11 : vector<8x8xf32> to vector<1x8x8xf32>
    %13 = vector.extract_strided_slice %7 {offsets = [0, 0], sizes = [8, 8], strides = [1, 1]} : vector<8x32xf32> to vector<8x8xf32>
    %14 = vector.shape_cast %13 : vector<8x8xf32> to vector<1x8x8xf32>
    %15 = vector.extract_strided_slice %8 {offsets = [0, 0], sizes = [8, 8], strides = [1, 1]} : vector<8x32xf32> to vector<8x8xf32>
    %16 = vector.shape_cast %15 : vector<8x8xf32> to vector<1x8x8xf32>
    "tpu.trace_start"() <{level = 10 : i32, message = "bqd,bkd->bqk"}> : () -> ()
    %cst_5 = arith.constant dense<0.000000e+00> : vector<1x8x8xf32>
    %17 = tpu.matmul %12, %14, %cst_5 {dimension_numbers = #tpu.dot_dimension_numbers<[2], [2], [1], [1], [0, 0, 0, 1, 1, 1], [0], [0]>} : vector<1x8x8xf32>, vector<1x8x8xf32>, vector<1x8x8xf32> -> vector<1x8x8xf32>
    "tpu.trace_stop"() : () -> ()
    %cst_6 = arith.constant dense<0xFF800000> : vector<1x8xf32>
    %18 = vector.multi_reduction <maximumf>, %17, %cst_6 [2] : vector<1x8x8xf32> to vector<1x8xf32>
    %19 = vector.shape_cast %18 : vector<1x8xf32> to vector<1x8x1xf32>
    %20 = vector.broadcast %19 : vector<1x8x1xf32> to vector<1x8x8xf32>
    %21 = arith.subf %17, %20 : vector<1x8x8xf32>
    %22 = math.exp %21 : vector<1x8x8xf32>
    %cst_7 = arith.constant dense<0.000000e+00> : vector<1x8xf32>
    %23 = vector.multi_reduction <add>, %22, %cst_7 [2] : vector<1x8x8xf32> to vector<1x8xf32>
    %24 = vector.shape_cast %23 : vector<1x8xf32> to vector<1x8x1xf32>
    %25 = tpu.reciprocal %24 {approx = true} : vector<1x8x1xf32> -> vector<1x8x1xf32>
    %26 = vector.broadcast %25 : vector<1x8x1xf32> to vector<1x8x8xf32>
    %27 = arith.mulf %22, %26 : vector<1x8x8xf32>
    "tpu.trace_start"() <{level = 10 : i32, message = "bqk,bkd->bqd"}> : () -> ()
    %cst_8 = arith.constant dense<0.000000e+00> : vector<1x8x8xf32>
    %28 = tpu.matmul %27, %16, %cst_8 {dimension_numbers = #tpu.dot_dimension_numbers<[2], [1], [1], [2], [0, 0, 0, 1, 1, 2], [0], [0]>} : vector<1x8x8xf32>, vector<1x8x8xf32>, vector<1x8x8xf32> -> vector<1x8x8xf32>
    "tpu.trace_stop"() : () -> ()
    %29 = vector.extract_strided_slice %6 {offsets = [0, 8], sizes = [8, 8], strides = [1, 1]} : vector<8x32xf32> to vector<8x8xf32>
    %30 = vector.shape_cast %29 : vector<8x8xf32> to vector<1x8x8xf32>
    %31 = vector.extract_strided_slice %7 {offsets = [0, 8], sizes = [8, 8], strides = [1, 1]} : vector<8x32xf32> to vector<8x8xf32>
    %32 = vector.shape_cast %31 : vector<8x8xf32> to vector<1x8x8xf32>
    %33 = vector.extract_strided_slice %8 {offsets = [0, 8], sizes = [8, 8], strides = [1, 1]} : vector<8x32xf32> to vector<8x8xf32>
    %34 = vector.shape_cast %33 : vector<8x8xf32> to vector<1x8x8xf32>
    "tpu.trace_start"() <{level = 10 : i32, message = "bqd,bkd->bqk"}> : () -> ()
    %cst_9 = arith.constant dense<0.000000e+00> : vector<1x8x8xf32>
    %35 = tpu.matmul %30, %32, %cst_9 {dimension_numbers = #tpu.dot_dimension_numbers<[2], [2], [1], [1], [0, 0, 0, 1, 1, 1], [0], [0]>} : vector<1x8x8xf32>, vector<1x8x8xf32>, vector<1x8x8xf32> -> vector<1x8x8xf32>
    "tpu.trace_stop"() : () -> ()
    %cst_10 = arith.constant dense<0xFF800000> : vector<1x8xf32>
    %36 = vector.multi_reduction <maximumf>, %35, %cst_10 [2] : vector<1x8x8xf32> to vector<1x8xf32>
    %37 = vector.shape_cast %36 : vector<1x8xf32> to vector<1x8x1xf32>
    %38 = vector.broadcast %37 : vector<1x8x1xf32> to vector<1x8x8xf32>
    %39 = arith.subf %35, %38 : vector<1x8x8xf32>
    %40 = math.exp %39 : vector<1x8x8xf32>
    %cst_11 = arith.constant dense<0.000000e+00> : vector<1x8xf32>
    %41 = vector.multi_reduction <add>, %40, %cst_11 [2] : vector<1x8x8xf32> to vector<1x8xf32>
    %42 = vector.shape_cast %41 : vector<1x8xf32> to vector<1x8x1xf32>
    %43 = tpu.reciprocal %42 {approx = true} : vector<1x8x1xf32> -> vector<1x8x1xf32>
    %44 = vector.broadcast %43 : vector<1x8x1xf32> to vector<1x8x8xf32>
    %45 = arith.mulf %40, %44 : vector<1x8x8xf32>
    "tpu.trace_start"() <{level = 10 : i32, message = "bqk,bkd->bqd"}> : () -> ()
    %cst_12 = arith.constant dense<0.000000e+00> : vector<1x8x8xf32>
    %46 = tpu.matmul %45, %34, %cst_12 {dimension_numbers = #tpu.dot_dimension_numbers<[2], [1], [1], [2], [0, 0, 0, 1, 1, 2], [0], [0]>} : vector<1x8x8xf32>, vector<1x8x8xf32>, vector<1x8x8xf32> -> vector<1x8x8xf32>
    "tpu.trace_stop"() : () -> ()
    %47 = vector.extract_strided_slice %6 {offsets = [0, 16], sizes = [8, 8], strides = [1, 1]} : vector<8x32xf32> to vector<8x8xf32>
    %48 = vector.shape_cast %47 : vector<8x8xf32> to vector<1x8x8xf32>
    %49 = vector.extract_strided_slice %7 {offsets = [0, 16], sizes = [8, 8], strides = [1, 1]} : vector<8x32xf32> to vector<8x8xf32>
    %50 = vector.shape_cast %49 : vector<8x8xf32> to vector<1x8x8xf32>
    %51 = vector.extract_strided_slice %8 {offsets = [0, 16], sizes = [8, 8], strides = [1, 1]} : vector<8x32xf32> to vector<8x8xf32>
    %52 = vector.shape_cast %51 : vector<8x8xf32> to vector<1x8x8xf32>
    "tpu.trace_start"() <{level = 10 : i32, message = "bqd,bkd->bqk"}> : () -> ()
    %cst_13 = arith.constant dense<0.000000e+00> : vector<1x8x8xf32>
    %53 = tpu.matmul %48, %50, %cst_13 {dimension_numbers = #tpu.dot_dimension_numbers<[2], [2], [1], [1], [0, 0, 0, 1, 1, 1], [0], [0]>} : vector<1x8x8xf32>, vector<1x8x8xf32>, vector<1x8x8xf32> -> vector<1x8x8xf32>
    "tpu.trace_stop"() : () -> ()
    %cst_14 = arith.constant dense<0xFF800000> : vector<1x8xf32>
    %54 = vector.multi_reduction <maximumf>, %53, %cst_14 [2] : vector<1x8x8xf32> to vector<1x8xf32>
    %55 = vector.shape_cast %54 : vector<1x8xf32> to vector<1x8x1xf32>
    %56 = vector.broadcast %55 : vector<1x8x1xf32> to vector<1x8x8xf32>
    %57 = arith.subf %53, %56 : vector<1x8x8xf32>
    %58 = math.exp %57 : vector<1x8x8xf32>
    %cst_15 = arith.constant dense<0.000000e+00> : vector<1x8xf32>
    %59 = vector.multi_reduction <add>, %58, %cst_15 [2] : vector<1x8x8xf32> to vector<1x8xf32>
    %60 = vector.shape_cast %59 : vector<1x8xf32> to vector<1x8x1xf32>
    %61 = tpu.reciprocal %60 {approx = true} : vector<1x8x1xf32> -> vector<1x8x1xf32>
    %62 = vector.broadcast %61 : vector<1x8x1xf32> to vector<1x8x8xf32>
    %63 = arith.mulf %58, %62 : vector<1x8x8xf32>
    "tpu.trace_start"() <{level = 10 : i32, message = "bqk,bkd->bqd"}> : () -> ()
    %cst_16 = arith.constant dense<0.000000e+00> : vector<1x8x8xf32>
    %64 = tpu.matmul %63, %52, %cst_16 {dimension_numbers = #tpu.dot_dimension_numbers<[2], [1], [1], [2], [0, 0, 0, 1, 1, 2], [0], [0]>} : vector<1x8x8xf32>, vector<1x8x8xf32>, vector<1x8x8xf32> -> vector<1x8x8xf32>
    "tpu.trace_stop"() : () -> ()
    %65 = vector.extract_strided_slice %6 {offsets = [0, 24], sizes = [8, 8], strides = [1, 1]} : vector<8x32xf32> to vector<8x8xf32>
    %66 = vector.shape_cast %65 : vector<8x8xf32> to vector<1x8x8xf32>
    %67 = vector.extract_strided_slice %7 {offsets = [0, 24], sizes = [8, 8], strides = [1, 1]} : vector<8x32xf32> to vector<8x8xf32>
    %68 = vector.shape_cast %67 : vector<8x8xf32> to vector<1x8x8xf32>
    %69 = vector.extract_strided_slice %8 {offsets = [0, 24], sizes = [8, 8], strides = [1, 1]} : vector<8x32xf32> to vector<8x8xf32>
    %70 = vector.shape_cast %69 : vector<8x8xf32> to vector<1x8x8xf32>
    "tpu.trace_start"() <{level = 10 : i32, message = "bqd,bkd->bqk"}> : () -> ()
    %cst_17 = arith.constant dense<0.000000e+00> : vector<1x8x8xf32>
    %71 = tpu.matmul %66, %68, %cst_17 {dimension_numbers = #tpu.dot_dimension_numbers<[2], [2], [1], [1], [0, 0, 0, 1, 1, 1], [0], [0]>} : vector<1x8x8xf32>, vector<1x8x8xf32>, vector<1x8x8xf32> -> vector<1x8x8xf32>
    "tpu.trace_stop"() : () -> ()
    %cst_18 = arith.constant dense<0xFF800000> : vector<1x8xf32>
    %72 = vector.multi_reduction <maximumf>, %71, %cst_18 [2] : vector<1x8x8xf32> to vector<1x8xf32>
    %73 = vector.shape_cast %72 : vector<1x8xf32> to vector<1x8x1xf32>
    %74 = vector.broadcast %73 : vector<1x8x1xf32> to vector<1x8x8xf32>
    %75 = arith.subf %71, %74 : vector<1x8x8xf32>
    %76 = math.exp %75 : vector<1x8x8xf32>
    %cst_19 = arith.constant dense<0.000000e+00> : vector<1x8xf32>
    %77 = vector.multi_reduction <add>, %76, %cst_19 [2] : vector<1x8x8xf32> to vector<1x8xf32>
    %78 = vector.shape_cast %77 : vector<1x8xf32> to vector<1x8x1xf32>
    %79 = tpu.reciprocal %78 {approx = true} : vector<1x8x1xf32> -> vector<1x8x1xf32>
    %80 = vector.broadcast %79 : vector<1x8x1xf32> to vector<1x8x8xf32>
    %81 = arith.mulf %76, %80 : vector<1x8x8xf32>
    "tpu.trace_start"() <{level = 10 : i32, message = "bqk,bkd->bqd"}> : () -> ()
    %cst_20 = arith.constant dense<0.000000e+00> : vector<1x8x8xf32>
    %82 = tpu.matmul %81, %70, %cst_20 {dimension_numbers = #tpu.dot_dimension_numbers<[2], [1], [1], [2], [0, 0, 0, 1, 1, 2], [0], [0]>} : vector<1x8x8xf32>, vector<1x8x8xf32>, vector<1x8x8xf32> -> vector<1x8x8xf32>
    "tpu.trace_stop"() : () -> ()
    %83 = tpu.concatenate %28, %46, %64, %82 in 2 : vector<1x8x8xf32>, vector<1x8x8xf32>, vector<1x8x8xf32>, vector<1x8x8xf32> -> vector<1x8x32xf32>
    %84 = arith.addf %83, %10 : vector<1x8x32xf32>
    %cst_21 = arith.constant 0.000000e+00 : f32
    %85 = vector.broadcast %cst_21 : f32 to vector<1x8x32xf32>
    %86 = arith.maximumf %84, %85 : vector<1x8x32xf32>
    %c0_22 = arith.constant 0 : index
    %c0_23 = arith.constant 0 : index
    %c0_24 = arith.constant 0 : index
    %87 = vector.load %arg3[%c0_22, %c0_23, %c0_24] : memref<1x8x32xf32, #tpu.memory_space<vmem>>, vector<1x8x32xf32>
    tpu.vector_store %arg3[%c0_22, %c0_23, %c0_24], %86 {strides = array<i32>} : memref<1x8x32xf32, #tpu.memory_space<vmem>>, vector<1x8x32xf32>,
    return
  }
  func.func @transform_0(%arg0: i32) -> (i32, i32, i32) {
    %c0_i32 = arith.constant 0 : i32
    %c0_i32_0 = arith.constant 0 : i32
    %c0_i32_1 = arith.constant 0 : i32
    return %arg0, %c0_i32, %c0_i32_0 : i32, i32, i32
  }
  func.func @transform_1(%arg0: i32) -> (i32, i32) {
    %c0_i32 = arith.constant 0 : i32
    %c0_i32_0 = arith.constant 0 : i32
    %c0_i32_1 = arith.constant 0 : i32
    return %c0_i32, %c0_i32_0 : i32, i32
  }
  func.func @transform_2(%arg0: i32) -> (i32, i32, i32) {
    %c0_i32 = arith.constant 0 : i32
    %c0_i32_0 = arith.constant 0 : i32
    %c0_i32_1 = arith.constant 0 : i32
    return %arg0, %c0_i32, %c0_i32_0 : i32, i32, i32
  }
}

</mosaic_0001>

<llo_original>
// kernel: tpu_custom_call.1
$region0: #{tpu_custom_call.1}
  #allocation0 [shape = 'u32[]', space=smem, size = 0x4, offset = 0x4, fixed_abs, tag = 'smem constant byte address 0x4 - core index']
  #allocation1 [shape = 'u32[144,128]{1,0:T(1,128)}', space=vmem, size = 0x12000, scoped, tag = 'internal scratch']
  %s0 = inlined_call_operand.hbm [shape: f32[2,8,32], index: 0, kind: input, shape index: {}]
  %s1 = inlined_call_operand.hbm [shape: f32[32,128], index: 1, kind: input, shape index: {}]
  %s2 = inlined_call_operand.hbm [shape: f32[2,8,32], index: 2, kind: output, shape index: {}]
  %s3 = sld [smem:[#allocation0]]
  $region49: #{tpu_custom_call.1} parent=0
    _
  %s5 = ssub.s32 1, %s3
  %s6 = scalar_select 0, %s5, %s3
  $region1: #{tpu_custom_call.1} parent=0
    #allocation2 [shape = 'u8[8192]{0}', space=vmem, size = 0x2000, scoped, tag = 'input window, operand 0']
    #allocation3 [shape = 's32[2]{0}', space=sflag, size = 0x8, scoped, tag = 'scoped memory for tpu_custom_call.1']
    #allocation4 [shape = 's32[2]{0}', space=sflag, size = 0x8, scoped, tag = 'scoped memory for tpu_custom_call.1']
    #allocation5 [shape = 'u8[16384]{0}', space=vmem, size = 0x4000, scoped, tag = 'input window, operand 1, single buffered']
    #allocation6 [shape = 's32[1]{0}', space=sflag, size = 0x4, scoped, tag = 'scoped memory for tpu_custom_call.1']
    #allocation7 [shape = 'u8[8192]{0}', space=vmem, size = 0x2000, scoped, tag = 'output window, operand 0']
    %7 = vsyncpa [#allocation3], 0
    %s8 = scalar_lea.sflag [#allocation3], 1
    %9 = vsyncpa %s8, 0
    %10 = vsyncpa [#allocation6], 0
    %11 = vsyncpa [#allocation4], 0
    %s12 = scalar_lea.sflag [#allocation4], 1
    %13 = vsyncpa %s12, 0
    loop: start=0, step=1, limit=4
    $region2: #{tpu_custom_call.1} parent=1 // loop_pre_header
      _
    $region3: #{tpu_custom_call.1} parent=1 // loop_header
      %s15 = sphi 0, %s19
      %p16 = scmp.ge.s32.totalorder %s15, 4
      %s25 = sphi 0, %s27
      %s28 = sphi 0, %s25
      %s29 = sphi 0, %s28
      %s45 = sphi 0, %s29
      %s49 = sphi 0, %s49
      %s51 = sphi 0, %s49
      %s52 = sphi 0, %s51
      %s66 = sphi 0, %s52
      %s72 = sphi 0, %s74
      %s75 = sphi 0, %s72
      %s76 = sphi 0, %s75
      %s92 = sphi 0, %s76
    $region4: #{tpu_custom_call.1} parent=1 // loop_header_branch
      %18 = sbr.rel (%p16) target = $region8
    $region5: #{tpu_custom_call.1} parent=1 // loop_body
      %s20 = ssub.s32 %s15, 1
      %s21 = ssub.s32 %s15, 2
      %s22 = sadd.s32 %s15, 1
      %s23 = ssub.s32 %s15, %s22
      %p24 = scmp.eq.s32.totalorder %s23, 0
      %s26 = sadd.s32 %s25, 1
      %s27 = scalar_select %p24, %s25, %s26
      %p30 = pneg %p24
      %p31 = scmp.eq.s32.totalorder %s15, 1
      %p32 = por %p30, %p31
      %p33 = scmp.ne.s32.totalorder %s25, %s28
      %p34 = scmp.eq.s32.totalorder %s15, 0
      %p35 = por %p33, %p34
      %p36 = scmp.ne.s32.totalorder %s25, %s28
      %p37 = scmp.eq.s32.totalorder %s20, 1
      %p38 = por %p36, %p37
      %p39 = scmp.ne.s32.totalorder %s28, %s29
      %p40 = scmp.eq.s32.totalorder %s20, 0
      %p41 = por %p39, %p40
      %p42 = scmp.ne.s32.totalorder %s28, %s29
      %p43 = scmp.eq.s32.totalorder %s21, 1
      %p44 = por %p42, %p43
      %p46 = scmp.ne.s32.totalorder %s29, %s45
      %p47 = scmp.eq.s32.totalorder %s21, 0
      %p48 = por %p46, %p47
      %s50 = sadd.s32 %s49, 1
      %p53 = scmp.eq.s32.totalorder %s15, 1
      %p54 = scmp.ne.s32.totalorder %s49, %s51
      %p55 = scmp.eq.s32.totalorder %s15, 0
      %p56 = por %p54, %p55
      %p57 = scmp.ne.s32.totalorder %s49, %s51
      %p58 = scmp.eq.s32.totalorder %s20, 1
      %p59 = por %p57, %p58
      %p60 = scmp.ne.s32.totalorder %s51, %s52
      %p61 = scmp.eq.s32.totalorder %s20, 0
      %p62 = por %p60, %p61
      %p63 = scmp.ne.s32.totalorder %s51, %s52
      %p64 = scmp.eq.s32.totalorder %s21, 1
      %p65 = por %p63, %p64
      %p67 = scmp.ne.s32.totalorder %s52, %s66
      %p68 = scmp.eq.s32.totalorder %s21, 0
      %p69 = por %p67, %p68
      %s70 = ssub.s32 %s15, %s22
      %p71 = scmp.eq.s32.totalorder %s70, 0
      %s73 = sadd.s32 %s72, 1
      %s74 = scalar_select %p71, %s72, %s73
      %p77 = pneg %p71
      %p78 = scmp.eq.s32.totalorder %s15, 1
      %p79 = por %p77, %p78
      %p80 = scmp.ne.s32.totalorder %s72, %s75
      %p81 = scmp.eq.s32.totalorder %s15, 0
      %p82 = por %p80, %p81
      %p83 = scmp.ne.s32.totalorder %s72, %s75
      %p84 = scmp.eq.s32.totalorder %s20, 1
      %p85 = por %p83, %p84
      %p86 = scmp.ne.s32.totalorder %s75, %s76
      %p87 = scmp.eq.s32.totalorder %s20, 0
      %p88 = por %p86, %p87
      %p89 = scmp.ne.s32.totalorder %s75, %s76
      %p90 = scmp.eq.s32.totalorder %s21, 1
      %p91 = por %p89, %p90
      %p93 = scmp.ne.s32.totalorder %s76, %s92
      %p94 = scmp.eq.s32.totalorder %s21, 0
      %p95 = por %p93, %p94
      %p96 = scmp.le.s32.totalorder 1, %s15
      %p97 = scmp.lt.s32.totalorder %s15, 3
      %p98 = pnand %p96, %p97
      %p99 = pneg %p98
      // Predicated region
      $region9: #{tpu_custom_call.1} parent=5 // pred_check
        _
      $region10: #{tpu_custom_call.1} parent=5 // pred_check_branch
        %101 = sbr.rel (%p98) target = $region12
      $region11: #{tpu_custom_call.1} parent=5 // pred_region
        %s102 = ssub.s32 %s15, 1
        // Predicated region
        $region13: #{tpu_custom_call.1} parent=11 // pred_check
          %p103 = pneg %p62
        $region14: #{tpu_custom_call.1} parent=11 // pred_check_branch
          %105 = sbr.rel (%p103) target = $region16
        $region15: #{tpu_custom_call.1} parent=11 // pred_region
          %s107 = ssub.s32 512, 512
          %108 = vsyncadd [#allocation6], %s107
          %s109 = sshll.u32 [#allocation5], 4
          %s110 = int_to_ptr.vmem [resolvable:$true] %s109
          %115 = dma.hbm_to_vmem [thread:$0]  %s1, 512, %s110, [#allocation6], 128, 128, 8
        $region16: #{tpu_custom_call.1} parent=11 // pred_fallthru
          _
      $region12: #{tpu_custom_call.1} parent=5 // pred_fallthru
        _
      %p116 = scmp.lt.s32.totalorder %s15, 2
      // Predicated region
      $region17: #{tpu_custom_call.1} parent=5 // pred_check
        %p117 = pneg %p116
      $region18: #{tpu_custom_call.1} parent=5 // pred_check_branch
        %119 = sbr.rel (%p117) target = $region20
      $region19: #{tpu_custom_call.1} parent=5 // pred_region
        // Predicated region
        $region21: #{tpu_custom_call.1} parent=19 // pred_check
          %p120 = pneg %p35
        $region22: #{tpu_custom_call.1} parent=19 // pred_check_branch
          %122 = sbr.rel (%p120) target = $region24
        $region23: #{tpu_custom_call.1} parent=19 // pred_region
          %s123 = sand.u32 %s25, 1
          %s124 = scalar_lea.sflag [#allocation3], %s123
          %s125 = sand.u32 %s25, 1
          %s126 = smul.addr %s125, 8
          %s127 = scalar_lea.vmem [#allocation2], %s126
          %s129 = ssub.s32 128, 128
          %130 = vsyncadd %s124, %s129
          %s131 = smul.addr %s15, 128
          %s132 = scalar_lea.hbm %s0, %s131
          %s134 = sshll.u32 %s127, 4
          %s135 = int_to_ptr.vmem [resolvable:$true] %s134
          %137 = dma.hbm_to_vmem [thread:$0]  %s132, 128, %s135, %s124
        $region24: #{tpu_custom_call.1} parent=19 // pred_fallthru
          _
      $region20: #{tpu_custom_call.1} parent=5 // pred_fallthru
        _
      %p138 = scmp.le.s32.totalorder 1, %s15
      %p139 = scmp.lt.s32.totalorder %s15, 3
      %p140 = pnand %p138, %p139
      %p141 = pneg %p140
      // Predicated region
      $region25: #{tpu_custom_call.1} parent=5 // pred_check
        _
      $region26: #{tpu_custom_call.1} parent=5 // pred_check_branch
        %143 = sbr.rel (%p140) target = $region28
      $region27: #{tpu_custom_call.1} parent=5 // pred_region
        %s144 = ssub.s32 %s15, 1
        %s145 = sand.u32 %s28, 1
        %s146 = scalar_lea.sflag [#allocation3], %s145
        %s147 = sand.u32 %s28, 1
        %s148 = smul.addr %s147, 8
        %s149 = scalar_lea.vmem [#allocation2], %s148
        // Predicated region
        $region29: #{tpu_custom_call.1} parent=27 // pred_check
          %p150 = pneg %p41
        $region30: #{tpu_custom_call.1} parent=27 // pred_check_branch
          %152 = sbr.rel (%p150) target = $region32
        $region31: #{tpu_custom_call.1} parent=27 // pred_region
          %153 = dma.done %s146, 128
        $region32: #{tpu_custom_call.1} parent=27 // pred_fallthru
          _
        // Predicated region
        $region33: #{tpu_custom_call.1} parent=27 // pred_check
          %p154 = pneg %p62
        $region34: #{tpu_custom_call.1} parent=27 // pred_check_branch
          %156 = sbr.rel (%p154) target = $region36
        $region35: #{tpu_custom_call.1} parent=27 // pred_region
          %157 = dma.done [#allocation6], 512
        $region36: #{tpu_custom_call.1} parent=27 // pred_fallthru
          _
        %s158 = sand.u32 %s28, 1
        %s159 = scalar_lea.sflag [#allocation3], %s158
        %s160 = sand.u32 %s28, 1
        %s161 = smul.addr %s160, 8
        %s162 = scalar_lea.vmem [#allocation2], %s161
        %p163 = pneg %p41
        %p164 = pneg %p38
        %p165 = pneg %p62
        %p166 = pneg %p59
        %p167 = pneg %p88
        %p168 = pneg %p85
        %s169 = sand.u32 %s75, 1
        %s170 = scalar_lea.sflag [#allocation4], %s169
        %s171 = sand.u32 %s75, 1
        %s172 = smul.addr %s171, 8
        %s173 = scalar_lea.vmem [#allocation7], %s172
        %v174 = vld [vmem:[%s149] sm:$0xff]
        %v175 = vld [vmem:[#allocation5] sm:$0xff]
        %v176 = vld [vmem:[#allocation5 + $0x8] sm:$0xff]
        %v177 = vld [vmem:[#allocation5 + $0x10] sm:$0xff]
        %v178 = vld [vmem:[#allocation5 + $0x18] sm:$0xff]
        %vm179 = vcmask 261120
        %v181 = vsel %vm179, %v174, 0
        %183 = vmatprep.subr.mxu0 0.0
        %184 = vmatpush1.msra.mxu0 %v175
        %185 = vmatprep.subr.mxu0 0.0
        %186 = vmatpush1.msra.mxu0 %v176
        %187 = vmatprep.subr.mxu0 0.0
        %188 = vmatpush1.msra.mxu0 %v177
        %189 = vmatprep.subr.mxu0 0.0
        %190 = vmatpush1.msra.mxu0 %v178
        %191 = vmatprep.subr.mxu0 0.0
        %192 = vmatpush1.msra.mxu0 0.0
        %193 = vmatprep.subr.mxu0 0.0
        %194 = vmatpush1.msra.mxu0 0.0
        %195 = vmatprep.subr.mxu0 0.0
        %196 = vmatpush1.msra.mxu0 0.0
        %197 = vmatprep.subr.mxu0 0.0
        %198 = vmatpush1.msra.mxu0 0.0
        %199 = vmatprep.subr.mxu0 0.0
        %200 = vmatpush1.msra.mxu0 0.0
        %201 = vmatprep.subr.mxu0 0.0
        %202 = vmatpush1.msra.mxu0 0.0
        %203 = vmatprep.subr.mxu0 0.0
        %204 = vmatpush1.msra.mxu0 0.0
        %205 = vmatprep.subr.mxu0 0.0
        %206 = vmatpush1.msra.mxu0 0.0
        %207 = vmatprep.subr.mxu0 0.0
        %208 = vmatpush1.msra.mxu0 0.0
        %209 = vmatprep.subr.mxu0 0.0
        %210 = vmatpush1.msra.mxu0 0.0
        %211 = vmatprep.subr.mxu0 0.0
        %212 = vmatpush1.msra.mxu0 0.0
        %213 = vmatprep.subr.mxu0 0.0
        %214 = vmatpush1.msra.mxu0 0.0
        %215 = vmatprep.subr.mxu0 0.0
        %216 = vmatpush1.msra.mxu0 0.0
        %217 = vmatprep.subr.mxu0 0.0
        %218 = vmatpush1.msra.mxu0 0.0
        %219 = vmatprep.subr.mxu0 0.0
        %220 = vmatpush1.msra.mxu0 0.0
        %221 = vmatprep.subr.mxu0 0.0
        %222 = vmatpush1.msra.mxu0 0.0
        %223 = vmatprep.subr.mxu0 0.0
        %224 = vmatpush1.msra.mxu0 0.0
        %225 = vmatprep.subr.mxu0 0.0
        %226 = vmatpush1.msra.mxu0 0.0
        %227 = vmatprep.subr.mxu0 0.0
        %228 = vmatpush1.msra.mxu0 0.0
        %229 = vmatprep.subr.mxu0 0.0
        %230 = vmatpush1.msra.mxu0 0.0
        %231 = vmatprep.subr.mxu0 0.0
        %232 = vmatpush1.msra.mxu0 0.0
        %233 = vmatprep.subr.mxu0 0.0
        %234 = vmatpush1.msra.mxu0 0.0
        %235 = vmatprep.subr.mxu0 0.0
        %236 = vmatpush1.msra.mxu0 0.0
        %237 = vmatprep.subr.mxu0 0.0
        %238 = vmatpush1.msra.mxu0 0.0
        %239 = vmatprep.subr.mxu0 0.0
        %240 = vmatpush1.msra.mxu0 0.0
        %241 = vmatprep.subr.mxu0 0.0
        %242 = vmatpush1.msra.mxu0 0.0
        %243 = vmatprep.subr.mxu0 0.0
        %244 = vmatpush1.msra.mxu0 0.0
        %245 = vmatprep.subr.mxu0 0.0
        %246 = vmatpush1.msra.mxu0 0.0
        %247 = vmatprep.mubr.f32.mxu0 0.0
        %248 = vmatmul.mubr.f32.gmra.mrb[0].mxu0 %v181
        %v249 = vpop.f32.mrb[0].mxu0
        %v250 = vadd.f32 0.0, %v249
        %v251 = vpop.f32.mrb[0].mxu0
        %252 = vdwg.mxu0
        %v253 = vmul.f32 %v250, 0.35355338
        %255 = vrot.lane.b32.xlu0 %v250, 96
        %v256 = vpop.permute.xlu0 %255
        %vm257 = vcmask 64512
        %v259 = vsel %vm257, %v253, 0
        %v261 = vsel %vm257, %v256, 0
        %263 = vmatprep.subr.mxu0 0.0
        %264 = vmatpush1.xpose.msra.mxu0 %v261
        %265 = vmatprep.subr.mxu0 0.0
        %266 = vmatpush1.xpose.msra.mxu0 0.0
        %267 = vmatprep.subr.mxu0 0.0
        %268 = vmatpush1.xpose.msra.mxu0 0.0
        %269 = vmatprep.subr.mxu0 0.0
        %270 = vmatpush1.xpose.msra.mxu0 0.0
        %271 = vmatprep.subr.mxu0 0.0
        %272 = vmatpush1.xpose.msra.mxu0 0.0
        %273 = vmatprep.subr.mxu0 0.0
        %274 = vmatpush1.xpose.msra.mxu0 0.0
        %275 = vmatprep.subr.mxu0 0.0
        %276 = vmatpush1.xpose.msra.mxu0 0.0
        %277 = vmatprep.subr.mxu0 0.0
        %278 = vmatpush1.xpose.msra.mxu0 0.0
        %279 = vmatprep.subr.mxu0 0.0
        %280 = vmatpush1.xpose.msra.mxu0 0.0
        %281 = vmatprep.subr.mxu0 0.0
        %282 = vmatpush1.xpose.msra.mxu0 0.0
        %283 = vmatprep.subr.mxu0 0.0
        %284 = vmatpush1.xpose.msra.mxu0 0.0
        %285 = vmatprep.subr.mxu0 0.0
        %286 = vmatpush1.xpose.msra.mxu0 0.0
        %287 = vmatprep.subr.mxu0 0.0
        %288 = vmatpush1.xpose.msra.mxu0 0.0
        %289 = vmatprep.subr.mxu0 0.0
        %290 = vmatpush1.xpose.msra.mxu0 0.0
        %291 = vmatprep.subr.mxu0 0.0
        %292 = vmatpush1.xpose.msra.mxu0 0.0
        %293 = vmatprep.subr.mxu0 0.0
        %294 = vmatpush1.xpose.msra.mxu0 0.0
        %295 = vmatprep.subr.mxu0 0.0
        %296 = vmatpush1.xpose.msra.mxu0 0.0
        %297 = vmatprep.subr.mxu0 0.0
        %298 = vmatpush1.xpose.msra.mxu0 0.0
        %299 = vmatprep.subr.mxu0 0.0
        %300 = vmatpush1.xpose.msra.mxu0 0.0
        %301 = vmatprep.subr.mxu0 0.0
        %302 = vmatpush1.xpose.msra.mxu0 0.0
        %303 = vmatprep.subr.mxu0 0.0
        %304 = vmatpush1.xpose.msra.mxu0 0.0
        %305 = vmatprep.subr.mxu0 0.0
        %306 = vmatpush1.xpose.msra.mxu0 0.0
        %307 = vmatprep.subr.mxu0 0.0
        %308 = vmatpush1.xpose.msra.mxu0 0.0
        %309 = vmatprep.subr.mxu0 0.0
        %310 = vmatpush1.xpose.msra.mxu0 0.0
        %311 = vmatprep.subr.mxu0 0.0
        %312 = vmatpush1.xpose.msra.mxu0 0.0
        %313 = vmatprep.subr.mxu0 0.0
        %314 = vmatpush1.xpose.msra.mxu0 0.0
        %315 = vmatprep.subr.mxu0 0.0
        %316 = vmatpush1.xpose.msra.mxu0 0.0
        %317 = vmatprep.subr.mxu0 0.0
        %318 = vmatpush1.xpose.msra.mxu0 0.0
        %319 = vmatprep.subr.mxu0 0.0
        %320 = vmatpush1.xpose.msra.mxu0 0.0
        %321 = vmatprep.subr.mxu0 0.0
        %322 = vmatpush1.xpose.msra.mxu0 0.0
        %323 = vmatprep.subr.mxu0 0.0
        %324 = vmatpush1.xpose.msra.mxu0 0.0
        %325 = vmatprep.subr.mxu0 0.0
        %326 = vmatpush1.xpose.msra.mxu0 0.0
        %327 = vmatprep.mubr.f32.mxu0 0.0
        %328 = vmatmul.mubr.f32.gmra.mrb[0].mxu0 %v259
        %v329 = vpop.f32.mrb[0].mxu0
        %v330 = vadd.f32 0.0, %v329
        %v331 = vpop.f32.mrb[0].mxu0
        %332 = vdwg.mxu0
        %v333 = vsel %vm257, %v330, -inf
        %334 = vmax.xlane.f32.xlu0 %v333
        %v335 = vpop.xlane.xlu0 %334
        %v336 = vsub.f32 %v330, %v335
        %v337 = vmul.f32 %v336, 1.442695
        %v338 = vpow.pop %v337
        %v339 = vsel %vm257, %v338, 0.0
        %340 = vadd.xlane.f32.xlu0 %v339
        %v341 = vpop.xlane.xlu0 %340
        %v342 = vrcp.pop %v341
        %v343 = vmul.f32 %v338, %v342
        %344 = vrot.lane.b32.xlu0 %v250, 64
        %v345 = vpop.permute.xlu0 %344
        %v348 = vsel %vm257, %v343, 0
        %350 = vmatprep.subr.mxu0 0.0
        %351 = vmatpush1.msra.mxu0 %v345
        %352 = vmatprep.subr.mxu0 0.0
        %353 = vmatpush1.msra.mxu0 0.0
        %354 = vmatprep.subr.mxu0 0.0
        %355 = vmatpush1.msra.mxu0 0.0
        %356 = vmatprep.subr.mxu0 0.0
        %357 = vmatpush1.msra.mxu0 0.0
        %358 = vmatprep.subr.mxu0 0.0
        %359 = vmatpush1.msra.mxu0 0.0
        %360 = vmatprep.subr.mxu0 0.0
        %361 = vmatpush1.msra.mxu0 0.0
        %362 = vmatprep.subr.mxu0 0.0
        %363 = vmatpush1.msra.mxu0 0.0
        %364 = vmatprep.subr.mxu0 0.0
        %365 = vmatpush1.msra.mxu0 0.0
        %366 = vmatprep.subr.mxu0 0.0
        %367 = vmatpush1.msra.mxu0 0.0
        %368 = vmatprep.subr.mxu0 0.0
        %369 = vmatpush1.msra.mxu0 0.0
        %370 = vmatprep.subr.mxu0 0.0
        %371 = vmatpush1.msra.mxu0 0.0
        %372 = vmatprep.subr.mxu0 0.0
        %373 = vmatpush1.msra.mxu0 0.0
        %374 = vmatprep.subr.mxu0 0.0
        %375 = vmatpush1.msra.mxu0 0.0
        %376 = vmatprep.subr.mxu0 0.0
        %377 = vmatpush1.msra.mxu0 0.0
        %378 = vmatprep.subr.mxu0 0.0
        %379 = vmatpush1.msra.mxu0 0.0
        %380 = vmatprep.subr.mxu0 0.0
        %381 = vmatpush1.msra.mxu0 0.0
        %382 = vmatprep.subr.mxu0 0.0
        %383 = vmatpush1.msra.mxu0 0.0
        %384 = vmatprep.subr.mxu0 0.0
        %385 = vmatpush1.msra.mxu0 0.0
        %386 = vmatprep.subr.mxu0 0.0
        %387 = vmatpush1.msra.mxu0 0.0
        %388 = vmatprep.subr.mxu0 0.0
        %389 = vmatpush1.msra.mxu0 0.0
        %390 = vmatprep.subr.mxu0 0.0
        %391 = vmatpush1.msra.mxu0 0.0
        %392 = vmatprep.subr.mxu0 0.0
        %393 = vmatpush1.msra.mxu0 0.0
        %394 = vmatprep.subr.mxu0 0.0
        %395 = vmatpush1.msra.mxu0 0.0
        %396 = vmatprep.subr.mxu0 0.0
        %397 = vmatpush1.msra.mxu0 0.0
        %398 = vmatprep.subr.mxu0 0.0
        %399 = vmatpush1.msra.mxu0 0.0
        %400 = vmatprep.subr.mxu0 0.0
        %401 = vmatpush1.msra.mxu0 0.0
        %402 = vmatprep.subr.mxu0 0.0
        %403 = vmatpush1.msra.mxu0 0.0
        %404 = vmatprep.subr.mxu0 0.0
        %405 = vmatpush1.msra.mxu0 0.0
        %406 = vmatprep.subr.mxu0 0.0
        %407 = vmatpush1.msra.mxu0 0.0
        %408 = vmatprep.subr.mxu0 0.0
        %409 = vmatpush1.msra.mxu0 0.0
        %410 = vmatprep.subr.mxu0 0.0
        %411 = vmatpush1.msra.mxu0 0.0
        %412 = vmatprep.subr.mxu0 0.0
        %413 = vmatpush1.msra.mxu0 0.0
        %414 = vmatprep.mubr.f32.mxu0 0.0
        %415 = vmatmul.mubr.f32.gmra.mrb[0].mxu0 %v348
        %v416 = vpop.f32.mrb[0].mxu0
        %v417 = vadd.f32 0.0, %v416
        %v418 = vpop.f32.mrb[0].mxu0
        %419 = vdwg.mxu0
        %420 = vrot.lane.b32.xlu0 %v253, 120
        %v421 = vpop.permute.xlu0 %420
        %422 = vrot.lane.b32.xlu0 %v250, 88
        %v423 = vpop.permute.xlu0 %422
        %v424 = vsel %vm257, %v421, 0
        %v426 = vsel %vm257, %v423, 0
        %428 = vmatprep.subr.mxu0 0.0
        %429 = vmatpush1.xpose.msra.mxu0 %v426
        %430 = vmatprep.subr.mxu0 0.0
        %431 = vmatpush1.xpose.msra.mxu0 0.0
        %432 = vmatprep.subr.mxu0 0.0
        %433 = vmatpush1.xpose.msra.mxu0 0.0
        %434 = vmatprep.subr.mxu0 0.0
        %435 = vmatpush1.xpose.msra.mxu0 0.0
        %436 = vmatprep.subr.mxu0 0.0
        %437 = vmatpush1.xpose.msra.mxu0 0.0
        %438 = vmatprep.subr.mxu0 0.0
        %439 = vmatpush1.xpose.msra.mxu0 0.0
        %440 = vmatprep.subr.mxu0 0.0
        %441 = vmatpush1.xpose.msra.mxu0 0.0
        %442 = vmatprep.subr.mxu0 0.0
        %443 = vmatpush1.xpose.msra.mxu0 0.0
        %444 = vmatprep.subr.mxu0 0.0
        %445 = vmatpush1.xpose.msra.mxu0 0.0
        %446 = vmatprep.subr.mxu0 0.0
        %447 = vmatpush1.xpose.msra.mxu0 0.0
        %448 = vmatprep.subr.mxu0 0.0
        %449 = vmatpush1.xpose.msra.mxu0 0.0
        %450 = vmatprep.subr.mxu0 0.0
        %451 = vmatpush1.xpose.msra.mxu0 0.0
        %452 = vmatprep.subr.mxu0 0.0
        %453 = vmatpush1.xpose.msra.mxu0 0.0
        %454 = vmatprep.subr.mxu0 0.0
        %455 = vmatpush1.xpose.msra.mxu0 0.0
        %456 = vmatprep.subr.mxu0 0.0
        %457 = vmatpush1.xpose.msra.mxu0 0.0
        %458 = vmatprep.subr.mxu0 0.0
        %459 = vmatpush1.xpose.msra.mxu0 0.0
        %460 = vmatprep.subr.mxu0 0.0
        %461 = vmatpush1.xpose.msra.mxu0 0.0
        %462 = vmatprep.subr.mxu0 0.0
        %463 = vmatpush1.xpose.msra.mxu0 0.0
        %464 = vmatprep.subr.mxu0 0.0
        %465 = vmatpush1.xpose.msra.mxu0 0.0
        %466 = vmatprep.subr.mxu0 0.0
        %467 = vmatpush1.xpose.msra.mxu0 0.0
        %468 = vmatprep.subr.mxu0 0.0
        %469 = vmatpush1.xpose.msra.mxu0 0.0
        %470 = vmatprep.subr.mxu0 0.0
        %471 = vmatpush1.xpose.msra.mxu0 0.0
        %472 = vmatprep.subr.mxu0 0.0
        %473 = vmatpush1.xpose.msra.mxu0 0.0
        %474 = vmatprep.subr.mxu0 0.0
        %475 = vmatpush1.xpose.msra.mxu0 0.0
        %476 = vmatprep.subr.mxu0 0.0
        %477 = vmatpush1.xpose.msra.mxu0 0.0
        %478 = vmatprep.subr.mxu0 0.0
        %479 = vmatpush1.xpose.msra.mxu0 0.0
        %480 = vmatprep.subr.mxu0 0.0
        %481 = vmatpush1.xpose.msra.mxu0 0.0
        %482 = vmatprep.subr.mxu0 0.0
        %483 = vmatpush1.xpose.msra.mxu0 0.0
        %484 = vmatprep.subr.mxu0 0.0
        %485 = vmatpush1.xpose.msra.mxu0 0.0
        %486 = vmatprep.subr.mxu0 0.0
        %487 = vmatpush1.xpose.msra.mxu0 0.0
        %488 = vmatprep.subr.mxu0 0.0
        %489 = vmatpush1.xpose.msra.mxu0 0.0
        %490 = vmatprep.subr.mxu0 0.0
        %491 = vmatpush1.xpose.msra.mxu0 0.0
        %492 = vmatprep.mubr.f32.mxu0 0.0
        %493 = vmatmul.mubr.f32.gmra.mrb[0].mxu0 %v424
        %v494 = vpop.f32.mrb[0].mxu0
        %v495 = vadd.f32 0.0, %v494
        %v496 = vpop.f32.mrb[0].mxu0
        %497 = vdwg.mxu0
        %v498 = vsel %vm257, %v495, -inf
        %499 = vmax.xlane.f32.xlu0 %v498
        %v500 = vpop.xlane.xlu0 %499
        %v501 = vsub.f32 %v495, %v500
        %v502 = vmul.f32 %v501, 1.442695
        %v503 = vpow.pop %v502
        %v504 = vsel %vm257, %v503, 0.0
        %505 = vadd.xlane.f32.xlu0 %v504
        %v506 = vpop.xlane.xlu0 %505
        %v507 = vrcp.pop %v506
        %v508 = vmul.f32 %v503, %v507
        %509 = vrot.lane.b32.xlu0 %v250, 56
        %v510 = vpop.permute.xlu0 %509
        %v513 = vsel %vm257, %v508, 0
        %515 = vmatprep.subr.mxu0 0.0
        %516 = vmatpush1.msra.mxu0 %v510
        %517 = vmatprep.subr.mxu0 0.0
        %518 = vmatpush1.msra.mxu0 0.0
        %519 = vmatprep.subr.mxu0 0.0
        %520 = vmatpush1.msra.mxu0 0.0
        %521 = vmatprep.subr.mxu0 0.0
        %522 = vmatpush1.msra.mxu0 0.0
        %523 = vmatprep.subr.mxu0 0.0
        %524 = vmatpush1.msra.mxu0 0.0
        %525 = vmatprep.subr.mxu0 0.0
        %526 = vmatpush1.msra.mxu0 0.0
        %527 = vmatprep.subr.mxu0 0.0
        %528 = vmatpush1.msra.mxu0 0.0
        %529 = vmatprep.subr.mxu0 0.0
        %530 = vmatpush1.msra.mxu0 0.0
        %531 = vmatprep.subr.mxu0 0.0
        %532 = vmatpush1.msra.mxu0 0.0
        %533 = vmatprep.subr.mxu0 0.0
        %534 = vmatpush1.msra.mxu0 0.0
        %535 = vmatprep.subr.mxu0 0.0
        %536 = vmatpush1.msra.mxu0 0.0
        %537 = vmatprep.subr.mxu0 0.0
        %538 = vmatpush1.msra.mxu0 0.0
        %539 = vmatprep.subr.mxu0 0.0
        %540 = vmatpush1.msra.mxu0 0.0
        %541 = vmatprep.subr.mxu0 0.0
        %542 = vmatpush1.msra.mxu0 0.0
        %543 = vmatprep.subr.mxu0 0.0
        %544 = vmatpush1.msra.mxu0 0.0
        %545 = vmatprep.subr.mxu0 0.0
        %546 = vmatpush1.msra.mxu0 0.0
        %547 = vmatprep.subr.mxu0 0.0
        %548 = vmatpush1.msra.mxu0 0.0
        %549 = vmatprep.subr.mxu0 0.0
        %550 = vmatpush1.msra.mxu0 0.0
        %551 = vmatprep.subr.mxu0 0.0
        %552 = vmatpush1.msra.mxu0 0.0
        %553 = vmatprep.subr.mxu0 0.0
        %554 = vmatpush1.msra.mxu0 0.0
        %555 = vmatprep.subr.mxu0 0.0
        %556 = vmatpush1.msra.mxu0 0.0
        %557 = vmatprep.subr.mxu0 0.0
        %558 = vmatpush1.msra.mxu0 0.0
        %559 = vmatprep.subr.mxu0 0.0
        %560 = vmatpush1.msra.mxu0 0.0
        %561 = vmatprep.subr.mxu0 0.0
        %562 = vmatpush1.msra.mxu0 0.0
        %563 = vmatprep.subr.mxu0 0.0
        %564 = vmatpush1.msra.mxu0 0.0
        %565 = vmatprep.subr.mxu0 0.0
        %566 = vmatpush1.msra.mxu0 0.0
        %567 = vmatprep.subr.mxu0 0.0
        %568 = vmatpush1.msra.mxu0 0.0
        %569 = vmatprep.subr.mxu0 0.0
        %570 = vmatpush1.msra.mxu0 0.0
        %571 = vmatprep.subr.mxu0 0.0
        %572 = vmatpush1.msra.mxu0 0.0
        %573 = vmatprep.subr.mxu0 0.0
        %574 = vmatpush1.msra.mxu0 0.0
        %575 = vmatprep.subr.mxu0 0.0
        %576 = vmatpush1.msra.mxu0 0.0
        %577 = vmatprep.subr.mxu0 0.0
        %578 = vmatpush1.msra.mxu0 0.0
        %579 = vmatprep.mubr.f32.mxu0 0.0
        %580 = vmatmul.mubr.f32.gmra.mrb[0].mxu0 %v513
        %v581 = vpop.f32.mrb[0].mxu0
        %v582 = vadd.f32 0.0, %v581
        %v583 = vpop.f32.mrb[0].mxu0
        %584 = vdwg.mxu0
        %585 = vrot.lane.b32.xlu0 %v253, 112
        %v586 = vpop.permute.xlu0 %585
        %587 = vrot.lane.b32.xlu0 %v250, 80
        %v588 = vpop.permute.xlu0 %587
        %v589 = vsel %vm257, %v586, 0
        %v591 = vsel %vm257, %v588, 0
        %593 = vmatprep.subr.mxu0 0.0
        %594 = vmatpush1.xpose.msra.mxu0 %v591
        %595 = vmatprep.subr.mxu0 0.0
        %596 = vmatpush1.xpose.msra.mxu0 0.0
        %597 = vmatprep.subr.mxu0 0.0
        %598 = vmatpush1.xpose.msra.mxu0 0.0
        %599 = vmatprep.subr.mxu0 0.0
        %600 = vmatpush1.xpose.msra.mxu0 0.0
        %601 = vmatprep.subr.mxu0 0.0
        %602 = vmatpush1.xpose.msra.mxu0 0.0
        %603 = vmatprep.subr.mxu0 0.0
        %604 = vmatpush1.xpose.msra.mxu0 0.0
        %605 = vmatprep.subr.mxu0 0.0
        %606 = vmatpush1.xpose.msra.mxu0 0.0
        %607 = vmatprep.subr.mxu0 0.0
        %608 = vmatpush1.xpose.msra.mxu0 0.0
        %609 = vmatprep.subr.mxu0 0.0
        %610 = vmatpush1.xpose.msra.mxu0 0.0
        %611 = vmatprep.subr.mxu0 0.0
        %612 = vmatpush1.xpose.msra.mxu0 0.0
        %613 = vmatprep.subr.mxu0 0.0
        %614 = vmatpush1.xpose.msra.mxu0 0.0
        %615 = vmatprep.subr.mxu0 0.0
        %616 = vmatpush1.xpose.msra.mxu0 0.0
        %617 = vmatprep.subr.mxu0 0.0
        %618 = vmatpush1.xpose.msra.mxu0 0.0
        %619 = vmatprep.subr.mxu0 0.0
        %620 = vmatpush1.xpose.msra.mxu0 0.0
        %621 = vmatprep.subr.mxu0 0.0
        %622 = vmatpush1.xpose.msra.mxu0 0.0
        %623 = vmatprep.subr.mxu0 0.0
        %624 = vmatpush1.xpose.msra.mxu0 0.0
        %625 = vmatprep.subr.mxu0 0.0
        %626 = vmatpush1.xpose.msra.mxu0 0.0
        %627 = vmatprep.subr.mxu0 0.0
        %628 = vmatpush1.xpose.msra.mxu0 0.0
        %629 = vmatprep.subr.mxu0 0.0
        %630 = vmatpush1.xpose.msra.mxu0 0.0
        %631 = vmatprep.subr.mxu0 0.0
        %632 = vmatpush1.xpose.msra.mxu0 0.0
        %633 = vmatprep.subr.mxu0 0.0
        %634 = vmatpush1.xpose.msra.mxu0 0.0
        %635 = vmatprep.subr.mxu0 0.0
        %636 = vmatpush1.xpose.msra.mxu0 0.0
        %637 = vmatprep.subr.mxu0 0.0
        %638 = vmatpush1.xpose.msra.mxu0 0.0
        %639 = vmatprep.subr.mxu0 0.0
        %640 = vmatpush1.xpose.msra.mxu0 0.0
        %641 = vmatprep.subr.mxu0 0.0
        %642 = vmatpush1.xpose.msra.mxu0 0.0
        %643 = vmatprep.subr.mxu0 0.0
        %644 = vmatpush1.xpose.msra.mxu0 0.0
        %645 = vmatprep.subr.mxu0 0.0
        %646 = vmatpush1.xpose.msra.mxu0 0.0
        %647 = vmatprep.subr.mxu0 0.0
        %648 = vmatpush1.xpose.msra.mxu0 0.0
        %649 = vmatprep.subr.mxu0 0.0
        %650 = vmatpush1.xpose.msra.mxu0 0.0
        %651 = vmatprep.subr.mxu0 0.0
        %652 = vmatpush1.xpose.msra.mxu0 0.0
        %653 = vmatprep.subr.mxu0 0.0
        %654 = vmatpush1.xpose.msra.mxu0 0.0
        %655 = vmatprep.subr.mxu0 0.0
        %656 = vmatpush1.xpose.msra.mxu0 0.0
        %657 = vmatprep.mubr.f32.mxu0 0.0
        %658 = vmatmul.mubr.f32.gmra.mrb[0].mxu0 %v589
        %v659 = vpop.f32.mrb[0].mxu0
        %v660 = vadd.f32 0.0, %v659
        %v661 = vpop.f32.mrb[0].mxu0
        %662 = vdwg.mxu0
        %v663 = vsel %vm257, %v660, -inf
        %664 = vmax.xlane.f32.xlu0 %v663
        %v665 = vpop.xlane.xlu0 %664
        %v666 = vsub.f32 %v660, %v665
        %v667 = vmul.f32 %v666, 1.442695
        %v668 = vpow.pop %v667
        %v669 = vsel %vm257, %v668, 0.0
        %670 = vadd.xlane.f32.xlu0 %v669
        %v671 = vpop.xlane.xlu0 %670
        %v672 = vrcp.pop %v671
        %v673 = vmul.f32 %v668, %v672
        %674 = vrot.lane.b32.xlu0 %v250, 48
        %v675 = vpop.permute.xlu0 %674
        %v678 = vsel %vm257, %v673, 0
        %680 = vmatprep.subr.mxu0 0.0
        %681 = vmatpush1.msra.mxu0 %v675
        %682 = vmatprep.subr.mxu0 0.0
        %683 = vmatpush1.msra.mxu0 0.0
        %684 = vmatprep.subr.mxu0 0.0
        %685 = vmatpush1.msra.mxu0 0.0
        %686 = vmatprep.subr.mxu0 0.0
        %687 = vmatpush1.msra.mxu0 0.0
        %688 = vmatprep.subr.mxu0 0.0
        %689 = vmatpush1.msra.mxu0 0.0
        %690 = vmatprep.subr.mxu0 0.0
        %691 = vmatpush1.msra.mxu0 0.0
        %692 = vmatprep.subr.mxu0 0.0
        %693 = vmatpush1.msra.mxu0 0.0
        %694 = vmatprep.subr.mxu0 0.0
        %695 = vmatpush1.msra.mxu0 0.0
        %696 = vmatprep.subr.mxu0 0.0
        %697 = vmatpush1.msra.mxu0 0.0
        %698 = vmatprep.subr.mxu0 0.0
        %699 = vmatpush1.msra.mxu0 0.0
        %700 = vmatprep.subr.mxu0 0.0
        %701 = vmatpush1.msra.mxu0 0.0
        %702 = vmatprep.subr.mxu0 0.0
        %703 = vmatpush1.msra.mxu0 0.0
        %704 = vmatprep.subr.mxu0 0.0
        %705 = vmatpush1.msra.mxu0 0.0
        %706 = vmatprep.subr.mxu0 0.0
        %707 = vmatpush1.msra.mxu0 0.0
        %708 = vmatprep.subr.mxu0 0.0
        %709 = vmatpush1.msra.mxu0 0.0
        %710 = vmatprep.subr.mxu0 0.0
        %711 = vmatpush1.msra.mxu0 0.0
        %712 = vmatprep.subr.mxu0 0.0
        %713 = vmatpush1.msra.mxu0 0.0
        %714 = vmatprep.subr.mxu0 0.0
        %715 = vmatpush1.msra.mxu0 0.0
        %716 = vmatprep.subr.mxu0 0.0
        %717 = vmatpush1.msra.mxu0 0.0
        %718 = vmatprep.subr.mxu0 0.0
        %719 = vmatpush1.msra.mxu0 0.0
        %720 = vmatprep.subr.mxu0 0.0
        %721 = vmatpush1.msra.mxu0 0.0
        %722 = vmatprep.subr.mxu0 0.0
        %723 = vmatpush1.msra.mxu0 0.0
        %724 = vmatprep.subr.mxu0 0.0
        %725 = vmatpush1.msra.mxu0 0.0
        %726 = vmatprep.subr.mxu0 0.0
        %727 = vmatpush1.msra.mxu0 0.0
        %728 = vmatprep.subr.mxu0 0.0
        %729 = vmatpush1.msra.mxu0 0.0
        %730 = vmatprep.subr.mxu0 0.0
        %731 = vmatpush1.msra.mxu0 0.0
        %732 = vmatprep.subr.mxu0 0.0
        %733 = vmatpush1.msra.mxu0 0.0
        %734 = vmatprep.subr.mxu0 0.0
        %735 = vmatpush1.msra.mxu0 0.0
        %736 = vmatprep.subr.mxu0 0.0
        %737 = vmatpush1.msra.mxu0 0.0
        %738 = vmatprep.subr.mxu0 0.0
        %739 = vmatpush1.msra.mxu0 0.0
        %740 = vmatprep.subr.mxu0 0.0
        %741 = vmatpush1.msra.mxu0 0.0
        %742 = vmatprep.subr.mxu0 0.0
        %743 = vmatpush1.msra.mxu0 0.0
        %744 = vmatprep.mubr.f32.mxu0 0.0
        %745 = vmatmul.mubr.f32.gmra.mrb[0].mxu0 %v678
        %v746 = vpop.f32.mrb[0].mxu0
        %v747 = vadd.f32 0.0, %v746
        %v748 = vpop.f32.mrb[0].mxu0
        %749 = vdwg.mxu0
        %750 = vrot.lane.b32.xlu0 %v253, 104
        %v751 = vpop.permute.xlu0 %750
        %752 = vrot.lane.b32.xlu0 %v250, 72
        %v753 = vpop.permute.xlu0 %752
        %v754 = vsel %vm257, %v751, 0
        %v756 = vsel %vm257, %v753, 0
        %758 = vmatprep.subr.mxu0 0.0
        %759 = vmatpush1.xpose.msra.mxu0 %v756
        %760 = vmatprep.subr.mxu0 0.0
        %761 = vmatpush1.xpose.msra.mxu0 0.0
        %762 = vmatprep.subr.mxu0 0.0
        %763 = vmatpush1.xpose.msra.mxu0 0.0
        %764 = vmatprep.subr.mxu0 0.0
        %765 = vmatpush1.xpose.msra.mxu0 0.0
        %766 = vmatprep.subr.mxu0 0.0
        %767 = vmatpush1.xpose.msra.mxu0 0.0
        %768 = vmatprep.subr.mxu0 0.0
        %769 = vmatpush1.xpose.msra.mxu0 0.0
        %770 = vmatprep.subr.mxu0 0.0
        %771 = vmatpush1.xpose.msra.mxu0 0.0
        %772 = vmatprep.subr.mxu0 0.0
        %773 = vmatpush1.xpose.msra.mxu0 0.0
        %774 = vmatprep.subr.mxu0 0.0
        %775 = vmatpush1.xpose.msra.mxu0 0.0
        %776 = vmatprep.subr.mxu0 0.0
        %777 = vmatpush1.xpose.msra.mxu0 0.0
        %778 = vmatprep.subr.mxu0 0.0
        %779 = vmatpush1.xpose.msra.mxu0 0.0
        %780 = vmatprep.subr.mxu0 0.0
        %781 = vmatpush1.xpose.msra.mxu0 0.0
        %782 = vmatprep.subr.mxu0 0.0
        %783 = vmatpush1.xpose.msra.mxu0 0.0
        %784 = vmatprep.subr.mxu0 0.0
        %785 = vmatpush1.xpose.msra.mxu0 0.0
        %786 = vmatprep.subr.mxu0 0.0
        %787 = vmatpush1.xpose.msra.mxu0 0.0
        %788 = vmatprep.subr.mxu0 0.0
        %789 = vmatpush1.xpose.msra.mxu0 0.0
        %790 = vmatprep.subr.mxu0 0.0
        %791 = vmatpush1.xpose.msra.mxu0 0.0
        %792 = vmatprep.subr.mxu0 0.0
        %793 = vmatpush1.xpose.msra.mxu0 0.0
        %794 = vmatprep.subr.mxu0 0.0
        %795 = vmatpush1.xpose.msra.mxu0 0.0
        %796 = vmatprep.subr.mxu0 0.0
        %797 = vmatpush1.xpose.msra.mxu0 0.0
        %798 = vmatprep.subr.mxu0 0.0
        %799 = vmatpush1.xpose.msra.mxu0 0.0
        %800 = vmatprep.subr.mxu0 0.0
        %801 = vmatpush1.xpose.msra.mxu0 0.0
        %802 = vmatprep.subr.mxu0 0.0
        %803 = vmatpush1.xpose.msra.mxu0 0.0
        %804 = vmatprep.subr.mxu0 0.0
        %805 = vmatpush1.xpose.msra.mxu0 0.0
        %806 = vmatprep.subr.mxu0 0.0
        %807 = vmatpush1.xpose.msra.mxu0 0.0
        %808 = vmatprep.subr.mxu0 0.0
        %809 = vmatpush1.xpose.msra.mxu0 0.0
        %810 = vmatprep.subr.mxu0 0.0
        %811 = vmatpush1.xpose.msra.mxu0 0.0
        %812 = vmatprep.subr.mxu0 0.0
        %813 = vmatpush1.xpose.msra.mxu0 0.0
        %814 = vmatprep.subr.mxu0 0.0
        %815 = vmatpush1.xpose.msra.mxu0 0.0
        %816 = vmatprep.subr.mxu0 0.0
        %817 = vmatpush1.xpose.msra.mxu0 0.0
        %818 = vmatprep.subr.mxu0 0.0
        %819 = vmatpush1.xpose.msra.mxu0 0.0
        %820 = vmatprep.subr.mxu0 0.0
        %821 = vmatpush1.xpose.msra.mxu0 0.0
        %822 = vmatprep.mubr.f32.mxu0 0.0
        %823 = vmatmul.mubr.f32.gmra.mrb[0].mxu0 %v754
        %v824 = vpop.f32.mrb[0].mxu0
        %v825 = vadd.f32 0.0, %v824
        %v826 = vpop.f32.mrb[0].mxu0
        %827 = vdwg.mxu0
        %v828 = vsel %vm257, %v825, -inf
        %829 = vmax.xlane.f32.xlu0 %v828
        %v830 = vpop.xlane.xlu0 %829
        %v831 = vsub.f32 %v825, %v830
        %v832 = vmul.f32 %v831, 1.442695
        %v833 = vpow.pop %v832
        %v834 = vsel %vm257, %v833, 0.0
        %835 = vadd.xlane.f32.xlu0 %v834
        %v836 = vpop.xlane.xlu0 %835
        %v837 = vrcp.pop %v836
        %v838 = vmul.f32 %v833, %v837
        %839 = vrot.lane.b32.xlu0 %v250, 40
        %v840 = vpop.permute.xlu0 %839
        %v843 = vsel %vm257, %v838, 0
        %845 = vmatprep.subr.mxu0 0.0
        %846 = vmatpush1.msra.mxu0 %v840
        %847 = vmatprep.subr.mxu0 0.0
        %848 = vmatpush1.msra.mxu0 0.0
        %849 = vmatprep.subr.mxu0 0.0
        %850 = vmatpush1.msra.mxu0 0.0
        %851 = vmatprep.subr.mxu0 0.0
        %852 = vmatpush1.msra.mxu0 0.0
        %853 = vmatprep.subr.mxu0 0.0
        %854 = vmatpush1.msra.mxu0 0.0
        %855 = vmatprep.subr.mxu0 0.0
        %856 = vmatpush1.msra.mxu0 0.0
        %857 = vmatprep.subr.mxu0 0.0
        %858 = vmatpush1.msra.mxu0 0.0
        %859 = vmatprep.subr.mxu0 0.0
        %860 = vmatpush1.msra.mxu0 0.0
        %861 = vmatprep.subr.mxu0 0.0
        %862 = vmatpush1.msra.mxu0 0.0
        %863 = vmatprep.subr.mxu0 0.0
        %864 = vmatpush1.msra.mxu0 0.0
        %865 = vmatprep.subr.mxu0 0.0
        %866 = vmatpush1.msra.mxu0 0.0
        %867 = vmatprep.subr.mxu0 0.0
        %868 = vmatpush1.msra.mxu0 0.0
        %869 = vmatprep.subr.mxu0 0.0
        %870 = vmatpush1.msra.mxu0 0.0
        %871 = vmatprep.subr.mxu0 0.0
        %872 = vmatpush1.msra.mxu0 0.0
        %873 = vmatprep.subr.mxu0 0.0
        %874 = vmatpush1.msra.mxu0 0.0
        %875 = vmatprep.subr.mxu0 0.0
        %876 = vmatpush1.msra.mxu0 0.0
        %877 = vmatprep.subr.mxu0 0.0
        %878 = vmatpush1.msra.mxu0 0.0
        %879 = vmatprep.subr.mxu0 0.0
        %880 = vmatpush1.msra.mxu0 0.0
        %881 = vmatprep.subr.mxu0 0.0
        %882 = vmatpush1.msra.mxu0 0.0
        %883 = vmatprep.subr.mxu0 0.0
        %884 = vmatpush1.msra.mxu0 0.0
        %885 = vmatprep.subr.mxu0 0.0
        %886 = vmatpush1.msra.mxu0 0.0
        %887 = vmatprep.subr.mxu0 0.0
        %888 = vmatpush1.msra.mxu0 0.0
        %889 = vmatprep.subr.mxu0 0.0
        %890 = vmatpush1.msra.mxu0 0.0
        %891 = vmatprep.subr.mxu0 0.0
        %892 = vmatpush1.msra.mxu0 0.0
        %893 = vmatprep.subr.mxu0 0.0
        %894 = vmatpush1.msra.mxu0 0.0
        %895 = vmatprep.subr.mxu0 0.0
        %896 = vmatpush1.msra.mxu0 0.0
        %897 = vmatprep.subr.mxu0 0.0
        %898 = vmatpush1.msra.mxu0 0.0
        %899 = vmatprep.subr.mxu0 0.0
        %900 = vmatpush1.msra.mxu0 0.0
        %901 = vmatprep.subr.mxu0 0.0
        %902 = vmatpush1.msra.mxu0 0.0
        %903 = vmatprep.subr.mxu0 0.0
        %904 = vmatpush1.msra.mxu0 0.0
        %905 = vmatprep.subr.mxu0 0.0
        %906 = vmatpush1.msra.mxu0 0.0
        %907 = vmatprep.subr.mxu0 0.0
        %908 = vmatpush1.msra.mxu0 0.0
        %909 = vmatprep.mubr.f32.mxu0 0.0
        %910 = vmatmul.mubr.f32.gmra.mrb[0].mxu0 %v843
        %v911 = vpop.f32.mrb[0].mxu0
        %v912 = vadd.f32 0.0, %v911
        %v913 = vpop.f32.mrb[0].mxu0
        %914 = vdwg.mxu0
        %916 = vrot.lane.b32.xlu0 %v582, 8
        %v917 = vpop.permute.xlu0 %916
        %920 = vrot.lane.b32.xlu0 %v747, 16
        %v921 = vpop.permute.xlu0 %920
        %924 = vrot.lane.b32.xlu0 %v912, 24
        %v925 = vpop.permute.xlu0 %924
        %v927 = vsel %vm257, %v417, %v917
        %vm928 = vcmask 130048
        %v929 = vsel %vm928, %v927, %v921
        %vm930 = vcmask 195584
        %v931 = vsel %vm930, %v929, %v925
        %932 = vrot.lane.b32.xlu0 %v250, 32
        %v933 = vpop.permute.xlu0 %932
        %v935 = vadd.f32 %v931, %v933
        %v936 = vmax.f32 %v935, 0.0
        %937 = vst.msk [vmem:[%s173] sm:$0xff] %vm179, %v936
        %s938 = sand.u32 %s75, 1
        %s939 = scalar_lea.sflag [#allocation4], %s938
        %s940 = sand.u32 %s75, 1
        %s941 = smul.addr %s940, 8
        %s942 = scalar_lea.vmem [#allocation7], %s941
        // Predicated region
        $region37: #{tpu_custom_call.1} parent=27 // pred_check
          %p943 = pneg %p85
        $region38: #{tpu_custom_call.1} parent=27 // pred_check_branch
          %945 = sbr.rel (%p943) target = $region40
        $region39: #{tpu_custom_call.1} parent=27 // pred_region
          %s947 = ssub.s32 128, 128
          %948 = vsyncadd %s939, %s947
          %s949 = smul.addr %s20, 128
          %s950 = scalar_lea.hbm %s2, %s949
          %s952 = sshll.u32 %s942, 4
          %s953 = int_to_ptr.vmem [resolvable:$true] %s952
          %955 = dma.vmem_to_hbm [thread:$0]  %s953, 128, %s950, %s939
        $region40: #{tpu_custom_call.1} parent=27 // pred_fallthru
          _
      $region28: #{tpu_custom_call.1} parent=5 // pred_fallthru
        _
      %p956 = scmp.le.s32.totalorder 2, %s15
      // Predicated region
      $region41: #{tpu_custom_call.1} parent=5 // pred_check
        %p957 = pneg %p956
      $region42: #{tpu_custom_call.1} parent=5 // pred_check_branch
        %959 = sbr.rel (%p957) target = $region44
      $region43: #{tpu_custom_call.1} parent=5 // pred_region
        %s960 = ssub.s32 %s15, 2
        // Predicated region
        $region45: #{tpu_custom_call.1} parent=43 // pred_check
          %p961 = pneg %p91
        $region46: #{tpu_custom_call.1} parent=43 // pred_check_branch
          %963 = sbr.rel (%p961) target = $region48
        $region47: #{tpu_custom_call.1} parent=43 // pred_region
          %s964 = sand.u32 %s76, 1
          %s965 = scalar_lea.sflag [#allocation4], %s964
          %s966 = sand.u32 %s76, 1
          %s967 = smul.addr %s966, 8
          %s968 = scalar_lea.vmem [#allocation7], %s967
          %969 = dma.done %s965, 128
        $region48: #{tpu_custom_call.1} parent=43 // pred_fallthru
          _
      $region44: #{tpu_custom_call.1} parent=5 // pred_fallthru
        _
    $region6: #{tpu_custom_call.1} parent=1 // loop_footer
      %s19 = sadd.s32 1, %s15
    $region7: #{tpu_custom_call.1} parent=1 // loop_footer_branch
      %14 = sbr.rel target = $region3
    $region8: #{tpu_custom_call.1} parent=1 // loop_exit
      _
    %970 = vsyncpa [#allocation3], 1
    %s971 = scalar_lea.sflag [#allocation3], 1
    %972 = vsyncpa %s971, 1
    %973 = vsyncpa [#allocation6], 1
    %974 = vsyncpa [#allocation4], 1
    %s975 = scalar_lea.sflag [#allocation4], 1
    %976 = vsyncpa %s975, 1

</llo_original>
